<compile_context>
chip_gen: v6e
topology: v6e:2x2x1
jax: 0.10.0
libtpu: 0.0.40
codegen_flags: <defaults>
</compile_context>

<pallas_src>
import jax
import jax.numpy as jnp
from jax.experimental import pallas as pl
from jax.experimental.pallas import tpu as pltpu


def _round_up(n, m):
    return ((n + m - 1) // m) * m


def _pick_tile(dim, cap):
    """Largest multiple of 128 <= cap that divides `dim`; otherwise the full dim.

    Requiring divisibility keeps ragged contraction blocks (whose OOB reads are
    not guaranteed zero) out of the K axis, and keeps lane-dense tiles whenever
    the dimension is 128-aligned.
    """
    if dim % 128 == 0:
        start = min(cap, dim)
        start -= start % 128
        for cand in range(start, 0, -128):
            if dim % cand == 0:
                return cand
    return dim


def _ssm_proj_kernel(x_ref, b_ref, o_ref, acc_ref):
    # (tm, tk) @ (tk, tn) -> accumulate into f32 (tm, tn); write out on last K step.
    k = pl.program_id(2)

    @pl.when(k == 0)
    def _():
        acc_ref[...] = jnp.zeros_like(acc_ref)

    acc_ref[...] += jnp.dot(
        x_ref[...], b_ref[...], preferred_element_type=jnp.float32
    )

    @pl.when(k == pl.num_programs(2) - 1)
    def _():
        o_ref[...] = acc_ref[...].astype(o_ref.dtype)


def ssm_forward(x, b_proj, *, block_rows=1024, block_cols=512, block_k=512,
                use_pallas=None):
    """Computes `x @ b_proj` for x of shape (bsz, seq, embed) -> (bsz, seq, hidden)."""
    bsz, seq, e = x.shape
    e_w, h = b_proj.shape
    assert e == e_w, "embed dim mismatch between x and B"

    out_dtype = jnp.result_type(x.dtype, b_proj.dtype)

    m = bsz * seq
    if use_pallas is None:
        # Below ~a few MFLOPs the pallas_call launch + DMA setup dominates;
        # let XLA fuse the tiny matmul instead.
        use_pallas = (m * e * h) >= (1 << 22)
    if not use_pallas:
        return jnp.matmul(x, b_proj).astype(out_dtype)

    x2 = x.reshape(m, e)  # contiguous flatten, no data movement

    # Tile selection.
    tm = min(block_rows, _round_up(m, 8))       # sublane-aligned row tile
    tn = _pick_tile(h, block_cols)              # lane-dense output tile when possible
    tk = _pick_tile(e, block_k)                 # lane-dense contraction tile when possible

    gm = pl.cdiv(m, tm)
    gn = pl.cdiv(h, tn)
    gk = pl.cdiv(e, tk)

    # Weight block is constant across the grid only when H and K are untiled.
    weight_constant = (gn == 1 and gk == 1)
    b_spec = pl.BlockSpec(
        (tk, tn),
        lambda i, j, k: (k, j),
        pipeline_mode=pl.Buffered(1) if weight_constant else pl.Buffered(2),
    )

    # Explicit VMEM budget: 2x double-buffered x and out tiles, (1 or 2)x weight
    # tile, plus the f32 accumulator; stay within v7x's 64 MiB physical VMEM.
    bx = jnp.dtype(x.dtype).itemsize
    bw = jnp.dtype(b_proj.dtype).itemsize
    bo = jnp.dtype(out_dtype).itemsize
    w_bufs = 1 if weight_constant else 2
    vmem_need = (2 * tm * tk * bx + w_bufs * tk * tn * bw
                 + 2 * tm * tn * bo + tm * tn * 4)
    vmem_limit = int(min(max(2 * vmem_need, 32 << 20), 64 << 20))

    out = pl.pallas_call(
        _ssm_proj_kernel,
        out_shape=jax.ShapeDtypeStruct((m, h), out_dtype),
        grid_spec=pltpu.PrefetchScalarGridSpec(
            num_scalar_prefetch=0,
            grid=(gm, gn, gk),
            in_specs=[
                pl.BlockSpec((tm, tk), lambda i, j, k: (i, k)),   # x row tile
                b_spec,                                           # weight tile
            ],
            out_specs=pl.BlockSpec((tm, tn), lambda i, j, k: (i, j)),
            scratch_shapes=[pltpu.VMEM((tm, tn), jnp.float32)],
        ),
        compiler_params=pltpu.CompilerParams(
            dimension_semantics=("parallel", "parallel", "arbitrary"),
            vmem_limit_bytes=vmem_limit,
        ),
    )(x2, b_proj)

    return out.reshape(bsz, seq, h)


def reference_forward(x, b_proj):
    """Plain-JAX transliteration of the computed part of the PyTorch forward."""
    return jnp.matmul(x, b_proj)


if __name__ == "__main__":
    # Small shapes consistent with the module: batch=2, seq=8, embed=32, hidden=32.
    bsz, seq_len, embed_dim, hidden_dim = 2, 8, 32, 32

    key = jax.random.PRNGKey(0)
    k_a, k_b, k_c, k_d, k_x = jax.random.split(key, 5)

    # torch.empty is uninitialized; use deterministic random values instead.
    # A, C, D mirror the module's parameters but are never used by the forward.
    A = jax.random.normal(k_a, (hidden_dim, hidden_dim), jnp.float32)   # unused
    B = jax.random.normal(k_b, (embed_dim, hidden_dim), jnp.float32)
    C = jax.random.normal(k_c, (hidden_dim, embed_dim), jnp.float32)    # unused
    D = jax.random.normal(k_d, (embed_dim, embed_dim), jnp.float32)     # unused

    x = jax.random.normal(k_x, (bsz, seq_len, embed_dim), jnp.float32)

    # Force the Pallas path so the kernel itself is exercised at demo size
    # (the auto heuristic would route shapes this small to plain jnp.matmul).
    out = ssm_forward(x, B, use_pallas=True)
    jax.block_until_ready(out)

    ref = reference_forward(x, B)
    assert out.shape == (bsz, seq_len, hidden_dim)
    assert out.dtype == ref.dtype
    assert jnp.allclose(out, ref, rtol=1e-5, atol=1e-5), "mismatch vs reference"

    # Also sanity-check the auto (fallback) path.
    out_auto = ssm_forward(x, B)
    jax.block_until_ready(out_auto)
    assert jnp.allclose(out_auto, ref, rtol=1e-5, atol=1e-5), "fallback mismatch"

    print("KERNEL_OK")
</pallas_src>

<mosaic_0001>
module attributes {stable_mosaic.version = 11 : i64} {
  func.func @_ssm_proj_kernel(%arg0: i32, %arg1: i32, %arg2: i32, %arg3: memref<16x32xf32, #tpu.memory_space<vmem>>, %arg4: memref<32x32xf32, #tpu.memory_space<vmem>>, %arg5: memref<16x32xf32, #tpu.memory_space<vmem>>, %arg6: memref<16x32xf32, #tpu.memory_space<vmem>>) attributes {dimension_semantics = [#tpu.dimension_semantics<parallel>, #tpu.dimension_semantics<parallel>, #tpu.dimension_semantics<arbitrary>], iteration_bounds = array<i64: 1, 1, 1>, scalar_prefetch = 0 : i64, scratch_operands = 1 : i64, tpu.core_type = #tpu.core_type<tc>, window_params = [{transform_indices = @transform_0, window_bounds = array<i64: 16, 32>}, {pipeline_mode = #tpu.pipeline_mode<synchronous>, transform_indices = @transform_1, window_bounds = array<i64: 32, 32>}, {transform_indices = @transform_2, window_bounds = array<i64: 16, 32>}]} {
    %c0_i32 = arith.constant 0 : i32
    %0 = arith.cmpi eq, %arg2, %c0_i32 : i32
    %1 = arith.extui %0 : i1 to i32
    %c0_i32_0 = arith.constant 0 : i32
    %2 = arith.cmpi ne, %1, %c0_i32_0 : i32
    scf.if %2 {
      %cst_10 = arith.constant 0.000000e+00 : f32
      %12 = vector.broadcast %cst_10 : f32 to vector<16x32xf32>
      %c0_11 = arith.constant 0 : index
      %c0_12 = arith.constant 0 : index
      %13 = vector.load %arg6[%c0_11, %c0_12] : memref<16x32xf32, #tpu.memory_space<vmem>>, vector<16x32xf32>
      tpu.vector_store %arg6[%c0_11, %c0_12], %12 {strides = array<i32>} : memref<16x32xf32, #tpu.memory_space<vmem>>, vector<16x32xf32>,
    } else {
    }
    %c0 = arith.constant 0 : index
    %c0_1 = arith.constant 0 : index
    %3 = vector.load %arg6[%c0, %c0_1] : memref<16x32xf32, #tpu.memory_space<vmem>>, vector<16x32xf32>
    %c0_2 = arith.constant 0 : index
    %c0_3 = arith.constant 0 : index
    %4 = vector.load %arg3[%c0_2, %c0_3] : memref<16x32xf32, #tpu.memory_space<vmem>>, vector<16x32xf32>
    %c0_4 = arith.constant 0 : index
    %c0_5 = arith.constant 0 : index
    %5 = vector.load %arg4[%c0_4, %c0_5] : memref<32x32xf32, #tpu.memory_space<vmem>>, vector<32x32xf32>
    %cst = arith.constant dense<0.000000e+00> : vector<16x32xf32>
    %6 = tpu.matmul %4, %5, %cst {dimension_numbers = #tpu.dot_dimension_numbers<[1], [0], [0], [1], [0, 0, 1, 1], [], []>} : vector<16x32xf32>, vector<32x32xf32>, vector<16x32xf32> -> vector<16x32xf32>
    %7 = arith.addf %3, %6 : vector<16x32xf32>
    %c0_6 = arith.constant 0 : index
    %c0_7 = arith.constant 0 : index
    %8 = vector.load %arg6[%c0_6, %c0_7] : memref<16x32xf32, #tpu.memory_space<vmem>>, vector<16x32xf32>
    tpu.vector_store %arg6[%c0_6, %c0_7], %7 {strides = array<i32>} : memref<16x32xf32, #tpu.memory_space<vmem>>, vector<16x32xf32>,
    %c0_i32_8 = arith.constant 0 : i32
    %9 = arith.cmpi eq, %arg2, %c0_i32_8 : i32
    %10 = arith.extui %9 : i1 to i32
    %c0_i32_9 = arith.constant 0 : i32
    %11 = arith.cmpi ne, %10, %c0_i32_9 : i32
    scf.if %11 {
      %c0_10 = arith.constant 0 : index
      %c0_11 = arith.constant 0 : index
      %12 = vector.load %arg6[%c0_10, %c0_11] : memref<16x32xf32, #tpu.memory_space<vmem>>, vector<16x32xf32>
      %c0_12 = arith.constant 0 : index
      %c0_13 = arith.constant 0 : index
      %13 = vector.load %arg5[%c0_12, %c0_13] : memref<16x32xf32, #tpu.memory_space<vmem>>, vector<16x32xf32>
      tpu.vector_store %arg5[%c0_12, %c0_13], %12 {strides = array<i32>} : memref<16x32xf32, #tpu.memory_space<vmem>>, vector<16x32xf32>,
    } else {
    }
    return
  }
  func.func @transform_0(%arg0: i32, %arg1: i32, %arg2: i32) -> (i32, i32) {
    %c0_i32 = arith.constant 0 : i32
    return %arg0, %arg2 : i32, i32
  }
  func.func @transform_1(%arg0: i32, %arg1: i32, %arg2: i32) -> (i32, i32) {
    %c0_i32 = arith.constant 0 : i32
    return %arg2, %arg1 : i32, i32
  }
  func.func @transform_2(%arg0: i32, %arg1: i32, %arg2: i32) -> (i32, i32) {
    %c0_i32 = arith.constant 0 : i32
    return %arg0, %arg1 : i32, i32
  }
}

</mosaic_0001>

<llo_original>
// kernel: tpu_custom_call.1
$region0: #{tpu_custom_call.1}
  #allocation0 [shape = 'u32[]', space=smem, size = 0x4, offset = 0x4, fixed_abs, tag = 'smem constant byte address 0x4 - core index']
  #allocation1 [shape = 'u32[144,128]{1,0:T(1,128)}', space=vmem, size = 0x12000, scoped, tag = 'internal scratch']
  #allocation2 [shape = 'f32[16,32]{1,0:T(8,128)}', space=vmem, size = 0x2000, scoped, tag = 'scratch operand']
  %s0 = inlined_call_operand.hbm [shape: f32[16,32], index: 0, kind: input, shape index: {}]
  %s1 = inlined_call_operand.hbm [shape: f32[32,32], index: 1, kind: input, shape index: {}]
  %s2 = inlined_call_operand.hbm [shape: f32[16,32], index: 2, kind: output, shape index: {}]
  %s3 = sld [smem:[#allocation0]]
  $region34: #{tpu_custom_call.1} parent=0
    _
  %s5 = ssub.s32 1, %s3
  %s6 = scalar_select 0, %s5, %s3
  $region1: #{tpu_custom_call.1} parent=0
    #allocation3 [shape = 'u8[8192]{0}', space=vmem, size = 0x2000, scoped, tag = 'input window, operand 0, single buffered']
    #allocation4 [shape = 's32[1]{0}', space=sflag, size = 0x4, scoped, tag = 'scoped memory for tpu_custom_call.1']
    #allocation5 [shape = 's32[1]{0}', space=sflag, size = 0x4, scoped, tag = 'scoped memory for tpu_custom_call.1']
    #allocation6 [shape = 'u8[16384]{0}', space=vmem, size = 0x4000, scoped, tag = 'input window, operand 1, single buffered']
    #allocation7 [shape = 's32[1]{0}', space=sflag, size = 0x4, scoped, tag = 'scoped memory for tpu_custom_call.1']
    #allocation8 [shape = 'u8[8192]{0}', space=vmem, size = 0x2000, scoped, tag = 'output window, operand 0, single buffered']
    %7 = vsyncpa [#allocation4], 0
    %8 = vsyncpa [#allocation7], 0
    %9 = vsyncpa [#allocation5], 0
    // Predicated region
    $region2: #{tpu_custom_call.1} parent=1 // pred_check
      _
    $region3: #{tpu_custom_call.1} parent=1 // pred_check_branch
      %11 = sbr.rel (0) target = $region5
    $region4: #{tpu_custom_call.1} parent=1 // pred_region
      %s13 = ssub.s32 256, 256
      %14 = vsyncadd [#allocation4], %s13
      %s15 = sshll.u32 [#allocation3], 4
      %s16 = int_to_ptr.vmem [resolvable:$true] %s15
      %21 = dma.hbm_to_vmem [thread:$0]  %s0, 256, %s16, [#allocation4], 128, 128, 8
    $region5: #{tpu_custom_call.1} parent=1 // pred_fallthru
      _
    // Predicated region
    $region6: #{tpu_custom_call.1} parent=1 // pred_check
      _
    $region7: #{tpu_custom_call.1} parent=1 // pred_check_branch
      %23 = sbr.rel (0) target = $region9
    $region8: #{tpu_custom_call.1} parent=1 // pred_region
      %s25 = ssub.s32 512, 512
      %26 = vsyncadd [#allocation7], %s25
      %s27 = sshll.u32 [#allocation6], 4
      %s28 = int_to_ptr.vmem [resolvable:$true] %s27
      %33 = dma.hbm_to_vmem [thread:$0]  %s1, 512, %s28, [#allocation7], 128, 128, 8
    $region9: #{tpu_custom_call.1} parent=1 // pred_fallthru
      _
    // Predicated region
    $region10: #{tpu_custom_call.1} parent=1 // pred_check
      _
    $region11: #{tpu_custom_call.1} parent=1 // pred_check_branch
      %35 = sbr.rel (0) target = $region13
    $region12: #{tpu_custom_call.1} parent=1 // pred_region
      %36 = dma.done [#allocation4], 256
    $region13: #{tpu_custom_call.1} parent=1 // pred_fallthru
      _
    // Predicated region
    $region14: #{tpu_custom_call.1} parent=1 // pred_check
      _
    $region15: #{tpu_custom_call.1} parent=1 // pred_check_branch
      %38 = sbr.rel (0) target = $region17
    $region16: #{tpu_custom_call.1} parent=1 // pred_region
      %39 = dma.done [#allocation7], 512
    $region17: #{tpu_custom_call.1} parent=1 // pred_fallthru
      _
    %p40 = scmp.eq.s32.totalorder 0, 0
    // Predicated region
    $region18: #{tpu_custom_call.1} parent=1 // pred_check
      %p41 = pneg %p40
    $region19: #{tpu_custom_call.1} parent=1 // pred_check_branch
      %43 = sbr.rel (%p41) target = $region21
    $region20: #{tpu_custom_call.1} parent=1 // pred_region
      %vm44 = vcmask 261120
      %45 = vst.msk [vmem:[#allocation2] sm:$0xff] %vm44, 0.0
      %46 = vst.msk [vmem:[#allocation2 + $0x8] sm:$0xff] %vm44, 0.0
    $region21: #{tpu_custom_call.1} parent=1 // pred_fallthru
      _
    %v47 = vld [vmem:[#allocation2] sm:$0xff]
    %v48 = vld [vmem:[#allocation2 + $0x8] sm:$0xff]
    %v49 = vld [vmem:[#allocation3] sm:$0xff]
    %v50 = vld [vmem:[#allocation3 + $0x8] sm:$0xff]
    %v51 = vld [vmem:[#allocation6] sm:$0xff]
    %v52 = vld [vmem:[#allocation6 + $0x8] sm:$0xff]
    %v53 = vld [vmem:[#allocation6 + $0x10] sm:$0xff]
    %v54 = vld [vmem:[#allocation6 + $0x18] sm:$0xff]
    %vm55 = vcmask 261120
    %v57 = vsel %vm55, %v49, 0
    %v60 = vsel %vm55, %v50, 0
    %62 = vmatprep.subr.mxu0 0.0
    %63 = vmatpush1.msra.mxu0 0.0
    %64 = vmatprep.subr.mxu0 0.0
    %65 = vmatpush1.msra.mxu0 0.0
    %66 = vmatprep.subr.mxu0 0.0
    %67 = vmatpush1.msra.mxu0 0.0
    %68 = vmatprep.subr.mxu0 0.0
    %69 = vmatpush1.msra.mxu0 0.0
    %70 = vmatprep.subr.mxu0 0.0
    %71 = vmatpush1.msra.mxu0 0.0
    %72 = vmatprep.subr.mxu0 0.0
    %73 = vmatpush1.msra.mxu0 0.0
    %74 = vmatprep.subr.mxu0 0.0
    %75 = vmatpush1.msra.mxu0 0.0
    %76 = vmatprep.subr.mxu0 0.0
    %77 = vmatpush1.msra.mxu0 0.0
    %78 = vmatprep.subr.mxu0 0.0
    %79 = vmatpush1.msra.mxu0 0.0
    %80 = vmatprep.subr.mxu0 0.0
    %81 = vmatpush1.msra.mxu0 0.0
    %82 = vmatprep.subr.mxu0 0.0
    %83 = vmatpush1.msra.mxu0 0.0
    %84 = vmatprep.subr.mxu0 0.0
    %85 = vmatpush1.msra.mxu0 0.0
    %86 = vmatprep.subr.mxu0 0.0
    %87 = vmatpush1.msra.mxu0 %v54
    %88 = vmatprep.subr.mxu0 0.0
    %89 = vmatpush1.msra.mxu0 %v53
    %90 = vmatprep.subr.mxu0 0.0
    %91 = vmatpush1.msra.mxu0 %v52
    %92 = vmatprep.subr.mxu0 0.0
    %93 = vmatpush1.msra.mxu0 %v51
    %94 = vmatprep.subr.mxu0 0.0
    %95 = vmatpush2.msra.mxu0 0.0
    %96 = vmatprep.subr.mxu0 0.0
    %97 = vmatpush2.msra.mxu0 0.0
    %98 = vmatprep.subr.mxu0 0.0
    %99 = vmatpush2.msra.mxu0 0.0
    %100 = vmatprep.subr.mxu0 0.0
    %101 = vmatpush2.msra.mxu0 0.0
    %102 = vmatprep.subr.mxu0 0.0
    %103 = vmatpush2.msra.mxu0 0.0
    %104 = vmatprep.subr.mxu0 0.0
    %105 = vmatpush2.msra.mxu0 0.0
    %106 = vmatprep.subr.mxu0 0.0
    %107 = vmatpush2.msra.mxu0 0.0
    %108 = vmatprep.subr.mxu0 0.0
    %109 = vmatpush2.msra.mxu0 0.0
    %110 = vmatprep.subr.mxu0 0.0
    %111 = vmatpush2.msra.mxu0 0.0
    %112 = vmatprep.subr.mxu0 0.0
    %113 = vmatpush2.msra.mxu0 0.0
    %114 = vmatprep.subr.mxu0 0.0
    %115 = vmatpush2.msra.mxu0 0.0
    %116 = vmatprep.subr.mxu0 0.0
    %117 = vmatpush2.msra.mxu0 0.0
    %118 = vmatprep.subr.mxu0 0.0
    %119 = vmatpush2.msra.mxu0 0.0
    %120 = vmatprep.subr.mxu0 0.0
    %121 = vmatpush2.msra.mxu0 0.0
    %122 = vmatprep.subr.mxu0 0.0
    %123 = vmatpush2.msra.mxu0 0.0
    %124 = vmatprep.subr.mxu0 0.0
    %125 = vmatpush2.msra.mxu0 0.0
    %126 = vmatprep.mubr.f32.mxu0 0.0
    %127 = vmatmul.mubr.f32.gmra.mxu0 %v57
    %v128 = vpop.f32.mrf.mxu0
    %v129 = vadd.f32 0.0, %v128
    %v130 = vpop.f32.mrf.mxu0
    %131 = vmatprep.mubr.f32.mxu0 0.0
    %132 = vmatmul.mubr.f32.gmra.mxu0 %v60
    %v133 = vpop.f32.mrf.mxu0
    %v134 = vadd.f32 0.0, %v133
    %v135 = vpop.f32.mrf.mxu0
    %136 = vdwg.mxu0
    %v137 = vadd.f32 %v47, %v129
    %v138 = vadd.f32 %v48, %v134
    %139 = vst.msk [vmem:[#allocation2] sm:$0xff] %vm55, %v137
    %140 = vst.msk [vmem:[#allocation2 + $0x8] sm:$0xff] %vm55, %v138
    // Predicated region
    $region22: #{tpu_custom_call.1} parent=1 // pred_check
      %p141 = pneg %p40
    $region23: #{tpu_custom_call.1} parent=1 // pred_check_branch
      %143 = sbr.rel (%p141) target = $region25
    $region24: #{tpu_custom_call.1} parent=1 // pred_region
      %v144 = vld [vmem:[#allocation2] sm:$0xff]
      %v145 = vld [vmem:[#allocation2 + $0x8] sm:$0xff]
      %146 = vst.msk [vmem:[#allocation8] sm:$0xff] %vm55, %v144
      %147 = vst.msk [vmem:[#allocation8 + $0x8] sm:$0xff] %vm55, %v145
    $region25: #{tpu_custom_call.1} parent=1 // pred_fallthru
      _
    // Predicated region
    $region26: #{tpu_custom_call.1} parent=1 // pred_check
      _
    $region27: #{tpu_custom_call.1} parent=1 // pred_check_branch
      %149 = sbr.rel (0) target = $region29
    $region28: #{tpu_custom_call.1} parent=1 // pred_region
      %s151 = ssub.s32 256, 256
      %152 = vsyncadd [#allocation5], %s151
      %s153 = sshll.u32 [#allocation8], 4
      %s154 = int_to_ptr.vmem [resolvable:$true] %s153
      %159 = dma.vmem_to_hbm [thread:$0]  %s154, 256, %s2, [#allocation5], 128, 128, 8
    $region29: #{tpu_custom_call.1} parent=1 // pred_fallthru
      _
    // Predicated region
    $region30: #{tpu_custom_call.1} parent=1 // pred_check
      _
    $region31: #{tpu_custom_call.1} parent=1 // pred_check_branch
      %161 = sbr.rel (0) target = $region33
    $region32: #{tpu_custom_call.1} parent=1 // pred_region
      %162 = dma.done [#allocation5], 256
    $region33: #{tpu_custom_call.1} parent=1 // pred_fallthru
      _
    %163 = vsyncpa [#allocation4], 1
    %164 = vsyncpa [#allocation7], 1
    %165 = vsyncpa [#allocation5], 1

</llo_original>
